<compile_context>
chip_gen: v7x
topology: tpu7x:2x2x1
jax: 0.10.0
libtpu: 0.0.40
codegen_flags: <defaults>
</compile_context>

<pallas_src>
import functools

import jax
import jax.numpy as jnp
from jax import lax
from jax.experimental import pallas as pl
from jax.experimental.pallas import tpu as pltpu

BN_EPS = 1e-5          # nn.BatchNorm3d default
LRELU_SLOPE = 0.01     # nn.LeakyReLU default


def _round_up(x, m):
    return ((x + m - 1) // m) * m


def _pick_tile_m(mg, kc):
    """Largest multiple-of-8 row tile whose bf16 patch block stays ~<=2MiB."""
    budget = 2 * 1024 * 1024
    tm = budget // max(1, kc * 2)
    tm = max(8, min(1024, (tm // 8) * 8))
    tm = min(tm, _round_up(mg, 8))
    return max(8, tm)


def _phase_info(l_in, l_out, k, s, p):
    """Per output-phase (od % s == r) tap set / offsets along one spatial axis."""
    info = []
    for r in range(s):
        c = (r + p) % s
        taps = list(range(c, k, s))          # contributing kernel indices
        q = (r + p) // s                     # input offset
        t = len(range(r, l_out, s))          # outputs in this phase
        info.append((c, taps, q, t))
    return info


# ----------------------------------------------------------------------------
# Pass 1: tiled matmul (conv) + per-channel sum / sum-of-squares accumulation.
# Grid: (G phase-groups, M tiles), both "arbitrary" (stats carry sequentially).
# ----------------------------------------------------------------------------
def _conv_stats_kernel(p_ref, w_ref, conv_ref, sum_ref, sq_ref, sum_acc, sq_acc):
    first = jnp.logical_and(pl.program_id(0) == 0, pl.program_id(1) == 0)

    @pl.when(first)
    def _():
        sum_acc[...] = jnp.zeros_like(sum_acc)
        sq_acc[...] = jnp.zeros_like(sq_acc)

    # (TM, Kc) bf16 @ (Kc, Cp) bf16 -> (TM, Cp) f32 on the MXU.
    y = jnp.dot(p_ref[0], w_ref[0], preferred_element_type=jnp.float32)
    conv_ref[0] = y

    sum_acc[...] += jnp.sum(y, axis=0, keepdims=True)
    sq_acc[...] += jnp.sum(y * y, axis=0, keepdims=True)
    # Resident (constant-index) outputs: only the final value reaches HBM.
    sum_ref[...] = sum_acc[...]
    sq_ref[...] = sq_acc[...]


# ----------------------------------------------------------------------------
# Pass 2: BatchNorm (batch statistics) + LeakyReLU, purely elementwise.
# ----------------------------------------------------------------------------
def _bn_lrelu_kernel(conv_ref, sum_ref, sq_ref, gamma_ref, beta_ref, o_ref, *,
                     inv_count):
    y = conv_ref[0]                               # (TM, Cp) f32
    mean = sum_ref[...] * inv_count               # (1, Cp)
    var = jnp.maximum(sq_ref[...] * inv_count - mean * mean, 0.0)
    scale = lax.rsqrt(var + BN_EPS) * gamma_ref[...]
    z = (y - mean) * scale + beta_ref[...]
    o_ref[0] = jnp.where(z > 0, z, LRELU_SLOPE * z)


@functools.partial(jax.jit, static_argnums=(6, 7, 8, 9))
def deconv3d_skip_forward(x, skip_in, weight, bias, gamma, beta,
                          kernel_size, stride, pad, extra=0):
    """Deconv3d_skip.forward.  x, skip_in: NCDHW; weight: (Cin, Cout, k, k, k).

    NOTE: the ConvTranspose3d bias is exactly cancelled by the training-mode
    BatchNorm mean subtraction, so it is not used in the compute path.
    """
    del bias
    k, s, p, op = int(kernel_size), int(stride), int(pad), int(extra)
    y = jnp.concatenate((x, skip_in), axis=1)           # torch.cat(dim=1)
    N, Cin, D, H, W = y.shape
    Cout = weight.shape[1]
    dims_in = (D, H, W)
    dims_out = tuple((L - 1) * s - 2 * p + k + op for L in dims_in)
    Do, Ho, Wo = dims_out

    x_cl = jnp.transpose(y, (0, 2, 3, 4, 1)).astype(jnp.bfloat16)  # channels-last
    w_bf = weight.astype(jnp.bfloat16)

    infos = [_phase_info(L, Lo, k, s, p) for L, Lo in zip(dims_in, dims_out)]
    uniform = all(
        len({len(taps) for _, taps, _, _ in inf}) == 1
        and len({t for *_, t in inf}) == 1
        and len(inf[0][1]) > 0
        for inf in infos)

    if uniform:
        # --- fast path: sub-pixel (stride) decomposition --------------------
        Jd, Jh, Jw = (len(inf[0][1]) for inf in infos)
        Td, Th, Tw = (inf[0][3] for inf in infos)
        pads = []
        for a, L in enumerate(dims_in):
            lo = max(0, max(len(taps) - 1 - q for _, taps, q, _ in infos[a]))
            hi = max(0, max(t + q - L for _, _, q, t in infos[a]))
            pads.append((lo, hi))
        x_pad = jnp.pad(x_cl, ((0, 0), pads[0], pads[1], pads[2], (0, 0)))
        G = s ** 3
        Kc = Jd * Jh * Jw * Cin
        Mg = N * Td * Th * Tw
        patch_groups, w_groups = [], []
        for rd in range(s):
            cd, _, qd, _ = infos[0][rd]
            for rh in range(s):
                ch, _, qh, _ = infos[1][rh]
                for rw in range(s):
                    cw, _, qw, _ = infos[2][rw]
                    cols = []
                    for jd in range(Jd):
                        sd = qd - jd + pads[0][0]
                        for jh in range(Jh):
                            sh = qh - jh + pads[1][0]
                            for jw in range(Jw):
                                sw = qw - jw + pads[2][0]
                                cols.append(
                                    x_pad[:, sd:sd + Td, sh:sh + Th, sw:sw + Tw, :])
                    pg = jnp.stack(cols, axis=4)        # (N,Td,Th,Tw,J^3,Cin)
                    patch_groups.append(pg.reshape(Mg, Kc))
                    wg = w_bf[:, :, cd::s, ch::s, cw::s]     # (Cin,Cout,Jd,Jh,Jw)
                    wg = jnp.transpose(wg, (2, 3, 4, 0, 1)).reshape(Kc, Cout)
                    w_groups.append(wg)
        patches = jnp.stack(patch_groups, axis=0)       # (G, Mg, Kc)
        wmats = jnp.stack(w_groups, axis=0)             # (G, Kc, Cout)
    else:
        # --- general fallback: zero-dilated input + flipped kernel ----------
        G = 1
        Dd, Hd, Wd = ((L - 1) * s + 1 for L in dims_in)
        x_dil = jnp.zeros((N, Dd, Hd, Wd, Cin), x_cl.dtype
                          ).at[:, ::s, ::s, ::s, :].set(x_cl)
        lo, hi = k - 1 - p, k - 1 - p + op
        x_pad = jnp.pad(x_dil, ((0, 0), (lo, hi), (lo, hi), (lo, hi), (0, 0)))
        cols = []
        for kd in range(k):
            for kh in range(k):
                for kw in range(k):
                    cols.append(x_pad[:, kd:kd + Do, kh:kh + Ho, kw:kw + Wo, :])
        Kc = (k ** 3) * Cin
        Mg = N * Do * Ho * Wo
        patches = jnp.stack(cols, axis=4).reshape(1, Mg, Kc)
        w_flip = w_bf[:, :, ::-1, ::-1, ::-1]
        wmats = jnp.transpose(w_flip, (2, 3, 4, 0, 1)).reshape(1, Kc, Cout)

    # TODO(synk): fuse the patch gather (im2col above) into the matmul kernel
    # via memory_space=pl.ANY + manual DMA so `patches` is never materialized.

    Cp = _round_up(Cout, 128)           # lane-dense output / MXU N-dimension
    TM = _pick_tile_m(Mg, Kc)
    Mg_p = _round_up(Mg, TM)
    n_m = Mg_p // TM

    # Zero row/channel padding is exact: padded rows contribute 0 to the sums
    # (no bias is added) and padded channels are sliced off afterwards.
    patches = jnp.pad(patches, ((0, 0), (0, Mg_p - Mg), (0, 0)))
    wmats = jnp.pad(wmats, ((0, 0), (0, 0), (0, Cp - Cout)))
    gamma_p = jnp.pad(gamma.astype(jnp.float32), (0, Cp - Cout)).reshape(1, Cp)
    beta_p = jnp.pad(beta.astype(jnp.float32), (0, Cp - Cout)).reshape(1, Cp)

    conv_out, sums, sqs = pl.pallas_call(
        _conv_stats_kernel,
        out_shape=(jax.ShapeDtypeStruct((G, Mg_p, Cp), jnp.float32),
                   jax.ShapeDtypeStruct((1, Cp), jnp.float32),
                   jax.ShapeDtypeStruct((1, Cp), jnp.float32)),
        grid=(G, n_m),
        in_specs=[
            pl.BlockSpec((1, TM, Kc), lambda g, i: (g, i, 0)),
            pl.BlockSpec((1, Kc, Cp), lambda g, i: (g, 0, 0)),
        ],
        out_specs=(
            pl.BlockSpec((1, TM, Cp), lambda g, i: (g, i, 0)),
            pl.BlockSpec((1, Cp), lambda g, i: (0, 0)),
            pl.BlockSpec((1, Cp), lambda g, i: (0, 0)),
        ),
        scratch_shapes=[pltpu.VMEM((1, Cp), jnp.float32),
                        pltpu.VMEM((1, Cp), jnp.float32)],
        compiler_params=pltpu.CompilerParams(
            dimension_semantics=("arbitrary", "arbitrary")),
    )(patches, wmats)

    out_p = pl.pallas_call(
        functools.partial(_bn_lrelu_kernel, inv_count=1.0 / float(G * Mg)),
        out_shape=jax.ShapeDtypeStruct((G, Mg_p, Cp), jnp.float32),
        grid=(G, n_m),
        in_specs=[
            pl.BlockSpec((1, TM, Cp), lambda g, i: (g, i, 0)),
            pl.BlockSpec((1, Cp), lambda g, i: (0, 0)),
            pl.BlockSpec((1, Cp), lambda g, i: (0, 0)),
            pl.BlockSpec((1, Cp), lambda g, i: (0, 0)),
            pl.BlockSpec((1, Cp), lambda g, i: (0, 0)),
        ],
        out_specs=pl.BlockSpec((1, TM, Cp), lambda g, i: (g, i, 0)),
        compiler_params=pltpu.CompilerParams(
            dimension_semantics=("parallel", "parallel")),
    )(conv_out, sums, sqs, gamma_p, beta_p)

    out_p = out_p[:, :Mg, :Cout]
    if uniform:
        out = out_p.reshape(s, s, s, N, Td, Th, Tw, Cout)
        out = jnp.transpose(out, (3, 4, 0, 5, 1, 6, 2, 7))   # interleave phases
        out = out.reshape(N, Do, Ho, Wo, Cout)
    else:
        out = out_p.reshape(N, Do, Ho, Wo, Cout)
    return jnp.transpose(out, (0, 4, 1, 2, 3))               # back to NCDHW


def reference_forward(x, skip_in, weight, bias, gamma, beta, k, s, p, op):
    """Pure-JAX reference (lax conv with lhs_dilation); bf16 inputs / f32
    accumulate to match the kernel's MXU precision."""
    y = jnp.concatenate((x, skip_in), axis=1).astype(jnp.bfloat16)
    w_bf = weight.astype(jnp.bfloat16)
    w_flip = w_bf[:, :, ::-1, ::-1, ::-1]
    rhs = jnp.transpose(w_flip, (1, 0, 2, 3, 4))             # (Cout,Cin,k,k,k)
    lo, hi = k - 1 - p, k - 1 - p + op
    conv = lax.conv_general_dilated(
        y, rhs, window_strides=(1, 1, 1),
        padding=[(lo, hi)] * 3, lhs_dilation=(s, s, s),
        dimension_numbers=('NCDHW', 'OIDHW', 'NCDHW'),
        preferred_element_type=jnp.float32)
    conv = conv + bias[None, :, None, None, None]
    mean = jnp.mean(conv, axis=(0, 2, 3, 4), keepdims=True)
    var = jnp.mean((conv - mean) ** 2, axis=(0, 2, 3, 4), keepdims=True)
    z = (conv - mean) / jnp.sqrt(var + BN_EPS)
    z = z * gamma[None, :, None, None, None] + beta[None, :, None, None, None]
    return jnp.where(z > 0, z, LRELU_SLOPE * z)


if __name__ == "__main__":
    root = jax.random.PRNGKey(0)

    def run_case(key, N, c_x, c_skip, ncout, k, s, p, op, D):
        ncin = c_x + c_skip
        kx, ksk, kw_, kb, kg, kbt = jax.random.split(key, 6)
        x = jax.random.normal(kx, (N, c_x, D, D, D), jnp.float32)
        skip_in = jax.random.normal(ksk, (N, c_skip, D, D, D), jnp.float32)
        weight = 0.1 * jax.random.normal(kw_, (ncin, ncout, k, k, k), jnp.float32)
        bias = 0.1 * jax.random.normal(kb, (ncout,), jnp.float32)
        gamma = 1.0 + 0.1 * jax.random.normal(kg, (ncout,), jnp.float32)
        beta = 0.1 * jax.random.normal(kbt, (ncout,), jnp.float32)

        out = deconv3d_skip_forward(x, skip_in, weight, bias, gamma, beta,
                                    k, s, p, op)
        out = jax.block_until_ready(out)
        ref = reference_forward(x, skip_in, weight, bias, gamma, beta, k, s, p, op)
        assert out.shape == ref.shape, (out.shape, ref.shape)
        max_err = float(jnp.max(jnp.abs(out - ref)))
        assert jnp.allclose(out, ref, atol=2e-3, rtol=2e-3), max_err
        return max_err

    k1, k2 = jax.random.split(root)
    # Primary GenRe/ShapeHD config (kernel 4, stride 2, pad 1) -> sub-pixel path.
    run_case(k1, N=2, c_x=4, c_skip=4, ncout=4, k=4, s=2, p=1, op=0, D=4)
    # Non-uniform config exercises the general (dilated) fallback path.
    run_case(k2, N=1, c_x=3, c_skip=5, ncout=6, k=3, s=2, p=1, op=1, D=4)
    print("KERNEL_OK")
</pallas_src>

<mosaic_0001>
module attributes {stable_mosaic.version = 11 : i64} {
  func.func @_conv_stats_kernel(%arg0: i32, %arg1: i32, %arg2: memref<1x128x64xbf16, #tpu.memory_space<vmem>>, %arg3: memref<1x64x128xbf16, #tpu.memory_space<vmem>>, %arg4: memref<1x128x128xf32, #tpu.memory_space<vmem>>, %arg5: memref<1x128xf32, #tpu.memory_space<vmem>>, %arg6: memref<1x128xf32, #tpu.memory_space<vmem>>, %arg7: memref<1x128xf32, #tpu.memory_space<vmem>>, %arg8: memref<1x128xf32, #tpu.memory_space<vmem>>) attributes {dimension_semantics = [#tpu.dimension_semantics<arbitrary>, #tpu.dimension_semantics<arbitrary>], iteration_bounds = array<i64: 8, 1>, scalar_prefetch = 0 : i64, scratch_operands = 2 : i64, tpu.core_type = #tpu.core_type<tc>, window_params = [{transform_indices = @transform_0, window_bounds = array<i64: 1, 128, 64>}, {transform_indices = @transform_1, window_bounds = array<i64: 1, 64, 128>}, {transform_indices = @transform_2, window_bounds = array<i64: 1, 128, 128>}, {pipeline_mode = #tpu.pipeline_mode<synchronous>, transform_indices = @transform_3, window_bounds = array<i64: 1, 128>}, {pipeline_mode = #tpu.pipeline_mode<synchronous>, transform_indices = @transform_4, window_bounds = array<i64: 1, 128>}]} {
    %c0_i32 = arith.constant 0 : i32
    %0 = arith.cmpi eq, %arg0, %c0_i32 : i32
    %c0_i32_0 = arith.constant 0 : i32
    %1 = arith.cmpi eq, %arg1, %c0_i32_0 : i32
    %2 = arith.andi %0, %1 : i1
    %3 = arith.extui %2 : i1 to i32
    %c0_i32_1 = arith.constant 0 : i32
    %4 = arith.cmpi ne, %3, %c0_i32_1 : i32
    scf.if %4 {
      %cst_28 = arith.constant 0.000000e+00 : f32
      %28 = vector.broadcast %cst_28 : f32 to vector<1x128xf32>
      %c0_29 = arith.constant 0 : index
      %c0_30 = arith.constant 0 : index
      %29 = vector.load %arg7[%c0_29, %c0_30] : memref<1x128xf32, #tpu.memory_space<vmem>>, vector<1x128xf32>
      tpu.vector_store %arg7[%c0_29, %c0_30], %28 {strides = array<i32>} : memref<1x128xf32, #tpu.memory_space<vmem>>, vector<1x128xf32>,
      %cst_31 = arith.constant 0.000000e+00 : f32
      %30 = vector.broadcast %cst_31 : f32 to vector<1x128xf32>
      %c0_32 = arith.constant 0 : index
      %c0_33 = arith.constant 0 : index
      %31 = vector.load %arg8[%c0_32, %c0_33] : memref<1x128xf32, #tpu.memory_space<vmem>>, vector<1x128xf32>
      tpu.vector_store %arg8[%c0_32, %c0_33], %30 {strides = array<i32>} : memref<1x128xf32, #tpu.memory_space<vmem>>, vector<1x128xf32>,
    } else {
    }
    %c0 = arith.constant 0 : index
    %c0_2 = arith.constant 0 : index
    %c0_3 = arith.constant 0 : index
    %5 = vector.load %arg2[%c0, %c0_2, %c0_3] : memref<1x128x64xbf16, #tpu.memory_space<vmem>>, vector<1x128x64xbf16>
    %6 = vector.shape_cast %5 : vector<1x128x64xbf16> to vector<128x64xbf16>
    %c0_4 = arith.constant 0 : index
    %c0_5 = arith.constant 0 : index
    %c0_6 = arith.constant 0 : index
    %7 = vector.load %arg3[%c0_4, %c0_5, %c0_6] : memref<1x64x128xbf16, #tpu.memory_space<vmem>>, vector<1x64x128xbf16>
    %8 = vector.shape_cast %7 : vector<1x64x128xbf16> to vector<64x128xbf16>
    %cst = arith.constant dense<0.000000e+00> : vector<128x128xf32>
    %9 = tpu.matmul %6, %8, %cst {dimension_numbers = #tpu.dot_dimension_numbers<[1], [0], [0], [1], [0, 0, 1, 1], [], []>} : vector<128x64xbf16>, vector<64x128xbf16>, vector<128x128xf32> -> vector<128x128xf32>
    %c0_7 = arith.constant 0 : index
    %c0_8 = arith.constant 0 : index
    %c0_9 = arith.constant 0 : index
    %10 = vector.load %arg4[%c0_7, %c0_8, %c0_9] : memref<1x128x128xf32, #tpu.memory_space<vmem>>, vector<1x128x128xf32>
    %11 = vector.shape_cast %10 : vector<1x128x128xf32> to vector<128x128xf32>
    %12 = vector.shape_cast %9 : vector<128x128xf32> to vector<1x128x128xf32>
    tpu.vector_store %arg4[%c0_7, %c0_8, %c0_9], %12 {strides = array<i32>} : memref<1x128x128xf32, #tpu.memory_space<vmem>>, vector<1x128x128xf32>,
    %c0_10 = arith.constant 0 : index
    %c0_11 = arith.constant 0 : index
    %13 = vector.load %arg7[%c0_10, %c0_11] : memref<1x128xf32, #tpu.memory_space<vmem>>, vector<1x128xf32>
    %cst_12 = arith.constant dense<0.000000e+00> : vector<128xf32>
    %14 = vector.multi_reduction <add>, %9, %cst_12 [0] : vector<128x128xf32> to vector<128xf32>
    %15 = vector.shape_cast %14 : vector<128xf32> to vector<1x128xf32>
    %16 = arith.addf %13, %15 : vector<1x128xf32>
    %c0_13 = arith.constant 0 : index
    %c0_14 = arith.constant 0 : index
    %17 = vector.load %arg7[%c0_13, %c0_14] : memref<1x128xf32, #tpu.memory_space<vmem>>, vector<1x128xf32>
    tpu.vector_store %arg7[%c0_13, %c0_14], %16 {strides = array<i32>} : memref<1x128xf32, #tpu.memory_space<vmem>>, vector<1x128xf32>,
    %c0_15 = arith.constant 0 : index
    %c0_16 = arith.constant 0 : index
    %18 = vector.load %arg8[%c0_15, %c0_16] : memref<1x128xf32, #tpu.memory_space<vmem>>, vector<1x128xf32>
    %19 = arith.mulf %9, %9 : vector<128x128xf32>
    %cst_17 = arith.constant dense<0.000000e+00> : vector<128xf32>
    %20 = vector.multi_reduction <add>, %19, %cst_17 [0] : vector<128x128xf32> to vector<128xf32>
    %21 = vector.shape_cast %20 : vector<128xf32> to vector<1x128xf32>
    %22 = arith.addf %18, %21 : vector<1x128xf32>
    %c0_18 = arith.constant 0 : index
    %c0_19 = arith.constant 0 : index
    %23 = vector.load %arg8[%c0_18, %c0_19] : memref<1x128xf32, #tpu.memory_space<vmem>>, vector<1x128xf32>
    tpu.vector_store %arg8[%c0_18, %c0_19], %22 {strides = array<i32>} : memref<1x128xf32, #tpu.memory_space<vmem>>, vector<1x128xf32>,
    %c0_20 = arith.constant 0 : index
    %c0_21 = arith.constant 0 : index
    %24 = vector.load %arg7[%c0_20, %c0_21] : memref<1x128xf32, #tpu.memory_space<vmem>>, vector<1x128xf32>
    %c0_22 = arith.constant 0 : index
    %c0_23 = arith.constant 0 : index
    %25 = vector.load %arg5[%c0_22, %c0_23] : memref<1x128xf32, #tpu.memory_space<vmem>>, vector<1x128xf32>
    tpu.vector_store %arg5[%c0_22, %c0_23], %24 {strides = array<i32>} : memref<1x128xf32, #tpu.memory_space<vmem>>, vector<1x128xf32>,
    %c0_24 = arith.constant 0 : index
    %c0_25 = arith.constant 0 : index
    %26 = vector.load %arg8[%c0_24, %c0_25] : memref<1x128xf32, #tpu.memory_space<vmem>>, vector<1x128xf32>
    %c0_26 = arith.constant 0 : index
    %c0_27 = arith.constant 0 : index
    %27 = vector.load %arg6[%c0_26, %c0_27] : memref<1x128xf32, #tpu.memory_space<vmem>>, vector<1x128xf32>
    tpu.vector_store %arg6[%c0_26, %c0_27], %26 {strides = array<i32>} : memref<1x128xf32, #tpu.memory_space<vmem>>, vector<1x128xf32>,
    return
  }
  func.func @transform_0(%arg0: i32, %arg1: i32) -> (i32, i32, i32) {
    %c0_i32 = arith.constant 0 : i32
    %c0_i32_0 = arith.constant 0 : i32
    return %arg0, %arg1, %c0_i32 : i32, i32, i32
  }
  func.func @transform_1(%arg0: i32, %arg1: i32) -> (i32, i32, i32) {
    %c0_i32 = arith.constant 0 : i32
    %c0_i32_0 = arith.constant 0 : i32
    %c0_i32_1 = arith.constant 0 : i32
    return %arg0, %c0_i32, %c0_i32_0 : i32, i32, i32
  }
  func.func @transform_2(%arg0: i32, %arg1: i32) -> (i32, i32, i32) {
    %c0_i32 = arith.constant 0 : i32
    %c0_i32_0 = arith.constant 0 : i32
    return %arg0, %arg1, %c0_i32 : i32, i32, i32
  }
  func.func @transform_3(%arg0: i32, %arg1: i32) -> (i32, i32) {
    %c0_i32 = arith.constant 0 : i32
    %c0_i32_0 = arith.constant 0 : i32
    %c0_i32_1 = arith.constant 0 : i32
    return %c0_i32, %c0_i32_0 : i32, i32
  }
  func.func @transform_4(%arg0: i32, %arg1: i32) -> (i32, i32) {
    %c0_i32 = arith.constant 0 : i32
    %c0_i32_0 = arith.constant 0 : i32
    %c0_i32_1 = arith.constant 0 : i32
    return %c0_i32, %c0_i32_0 : i32, i32
  }
}

module attributes {stable_mosaic.version = 11 : i64} {
  func.func @_bn_lrelu_kernel(%arg0: i32, %arg1: i32, %arg2: memref<1x128x128xf32, #tpu.memory_space<vmem>>, %arg3: memref<1x128xf32, #tpu.memory_space<vmem>>, %arg4: memref<1x128xf32, #tpu.memory_space<vmem>>, %arg5: memref<1x128xf32, #tpu.memory_space<vmem>>, %arg6: memref<1x128xf32, #tpu.memory_space<vmem>>, %arg7: memref<1x128x128xf32, #tpu.memory_space<vmem>>) attributes {dimension_semantics = [#tpu.dimension_semantics<parallel>, #tpu.dimension_semantics<parallel>], iteration_bounds = array<i64: 8, 1>, scalar_prefetch = 0 : i64, scratch_operands = 0 : i64, tpu.core_type = #tpu.core_type<tc>, window_params = [{transform_indices = @transform_0, window_bounds = array<i64: 1, 128, 128>}, {pipeline_mode = #tpu.pipeline_mode<synchronous>, transform_indices = @transform_1, window_bounds = array<i64: 1, 128>}, {pipeline_mode = #tpu.pipeline_mode<synchronous>, transform_indices = @transform_2, window_bounds = array<i64: 1, 128>}, {pipeline_mode = #tpu.pipeline_mode<synchronous>, transform_indices = @transform_3, window_bounds = array<i64: 1, 128>}, {pipeline_mode = #tpu.pipeline_mode<synchronous>, transform_indices = @transform_4, window_bounds = array<i64: 1, 128>}, {transform_indices = @transform_5, window_bounds = array<i64: 1, 128, 128>}]} {
    %c0 = arith.constant 0 : index
    %c0_0 = arith.constant 0 : index
    %c0_1 = arith.constant 0 : index
    %0 = vector.load %arg2[%c0, %c0_0, %c0_1] : memref<1x128x128xf32, #tpu.memory_space<vmem>>, vector<1x128x128xf32>
    %1 = vector.shape_cast %0 : vector<1x128x128xf32> to vector<128x128xf32>
    %c0_2 = arith.constant 0 : index
    %c0_3 = arith.constant 0 : index
    %2 = vector.load %arg3[%c0_2, %c0_3] : memref<1x128xf32, #tpu.memory_space<vmem>>, vector<1x128xf32>
    %cst = arith.constant 9.765625E-4 : f32
    %3 = vector.broadcast %cst : f32 to vector<1x128xf32>
    %4 = arith.mulf %2, %3 : vector<1x128xf32>
    %c0_4 = arith.constant 0 : index
    %c0_5 = arith.constant 0 : index
    %5 = vector.load %arg4[%c0_4, %c0_5] : memref<1x128xf32, #tpu.memory_space<vmem>>, vector<1x128xf32>
    %cst_6 = arith.constant 9.765625E-4 : f32
    %6 = vector.broadcast %cst_6 : f32 to vector<1x128xf32>
    %7 = arith.mulf %5, %6 : vector<1x128xf32>
    %8 = arith.mulf %4, %4 : vector<1x128xf32>
    %9 = arith.subf %7, %8 : vector<1x128xf32>
    %cst_7 = arith.constant 0.000000e+00 : f32
    %10 = vector.broadcast %cst_7 : f32 to vector<1x128xf32>
    %11 = arith.maximumf %9, %10 : vector<1x128xf32>
    %cst_8 = arith.constant 9.99999974E-6 : f32
    %12 = vector.broadcast %cst_8 : f32 to vector<1x128xf32>
    %13 = arith.addf %11, %12 : vector<1x128xf32>
    %14 = math.rsqrt %13 : vector<1x128xf32>
    %c0_9 = arith.constant 0 : index
    %c0_10 = arith.constant 0 : index
    %15 = vector.load %arg5[%c0_9, %c0_10] : memref<1x128xf32, #tpu.memory_space<vmem>>, vector<1x128xf32>
    %16 = arith.mulf %14, %15 : vector<1x128xf32>
    %17 = vector.broadcast %4 : vector<1x128xf32> to vector<128x128xf32>
    %18 = arith.subf %1, %17 : vector<128x128xf32>
    %19 = vector.broadcast %16 : vector<1x128xf32> to vector<128x128xf32>
    %20 = arith.mulf %18, %19 : vector<128x128xf32>
    %c0_11 = arith.constant 0 : index
    %c0_12 = arith.constant 0 : index
    %21 = vector.load %arg6[%c0_11, %c0_12] : memref<1x128xf32, #tpu.memory_space<vmem>>, vector<1x128xf32>
    %22 = vector.broadcast %21 : vector<1x128xf32> to vector<128x128xf32>
    %23 = arith.addf %20, %22 : vector<128x128xf32>
    %cst_13 = arith.constant 0.000000e+00 : f32
    %24 = vector.broadcast %cst_13 : f32 to vector<128x128xf32>
    %25 = arith.cmpf ogt, %23, %24 : vector<128x128xf32>
    %cst_14 = arith.constant 0.00999999977 : f32
    %26 = vector.broadcast %cst_14 : f32 to vector<128x128xf32>
    %27 = arith.mulf %26, %23 : vector<128x128xf32>
    %28 = arith.select %25, %23, %27 : vector<128x128xi1>, vector<128x128xf32>
    %c0_15 = arith.constant 0 : index
    %c0_16 = arith.constant 0 : index
    %c0_17 = arith.constant 0 : index
    %29 = vector.load %arg7[%c0_15, %c0_16, %c0_17] : memref<1x128x128xf32, #tpu.memory_space<vmem>>, vector<1x128x128xf32>
    %30 = vector.shape_cast %29 : vector<1x128x128xf32> to vector<128x128xf32>
    %31 = vector.shape_cast %28 : vector<128x128xf32> to vector<1x128x128xf32>
    tpu.vector_store %arg7[%c0_15, %c0_16, %c0_17], %31 {strides = array<i32>} : memref<1x128x128xf32, #tpu.memory_space<vmem>>, vector<1x128x128xf32>,
    return
  }
  func.func @transform_0(%arg0: i32, %arg1: i32) -> (i32, i32, i32) {
    %c0_i32 = arith.constant 0 : i32
    %c0_i32_0 = arith.constant 0 : i32
    return %arg0, %arg1, %c0_i32 : i32, i32, i32
  }
  func.func @transform_1(%arg0: i32, %arg1: i32) -> (i32, i32) {
    %c0_i32 = arith.constant 0 : i32
    %c0_i32_0 = arith.constant 0 : i32
    %c0_i32_1 = arith.constant 0 : i32
    return %c0_i32, %c0_i32_0 : i32, i32
  }
  func.func @transform_2(%arg0: i32, %arg1: i32) -> (i32, i32) {
    %c0_i32 = arith.constant 0 : i32
    %c0_i32_0 = arith.constant 0 : i32
    %c0_i32_1 = arith.constant 0 : i32
    return %c0_i32, %c0_i32_0 : i32, i32
  }
  func.func @transform_3(%arg0: i32, %arg1: i32) -> (i32, i32) {
    %c0_i32 = arith.constant 0 : i32
    %c0_i32_0 = arith.constant 0 : i32
    %c0_i32_1 = arith.constant 0 : i32
    return %c0_i32, %c0_i32_0 : i32, i32
  }
  func.func @transform_4(%arg0: i32, %arg1: i32) -> (i32, i32) {
    %c0_i32 = arith.constant 0 : i32
    %c0_i32_0 = arith.constant 0 : i32
    %c0_i32_1 = arith.constant 0 : i32
    return %c0_i32, %c0_i32_0 : i32, i32
  }
  func.func @transform_5(%arg0: i32, %arg1: i32) -> (i32, i32, i32) {
    %c0_i32 = arith.constant 0 : i32
    %c0_i32_0 = arith.constant 0 : i32
    return %arg0, %arg1, %c0_i32 : i32, i32, i32
  }
}

</mosaic_0001>

<llo_original>
// kernel: deconv3d_skip_forward.3
$region0: #{deconv3d_skip_forward.3}
  #allocation0 [shape = 'u32[]', space=smem, size = 0x4, offset = 0x4, fixed_abs, tag = 'smem constant byte address 0x4 - core index']
  #allocation1 [shape = 'u32[144,128]{1,0:T(1,128)}', space=vmem, size = 0x12000, scoped, tag = 'internal scratch']
  %s0 = inlined_call_operand.vmem [shape: f32[8,128,128], index: 0, kind: input, shape index: {}]
  %s1 = inlined_call_operand.vmem [shape: f32[1,128], index: 1, kind: input, shape index: {}]
  %s2 = inlined_call_operand.vmem [shape: f32[1,128], index: 2, kind: input, shape index: {}]
  %s3 = inlined_call_operand.vmem [shape: f32[1,128], index: 3, kind: input, shape index: {}]
  %s4 = inlined_call_operand.vmem [shape: f32[1,128], index: 4, kind: input, shape index: {}]
  %s5 = inlined_call_operand.vmem [shape: f32[8,128,128], index: 5, kind: output, shape index: {}]
  %s6 = sld [smem:[#allocation0]]
  $region53: #{deconv3d_skip_forward.3} parent=0
    _
  %s8 = ssub.s32 1, %s6
  %s9 = scalar_select 0, %s8, %s6
  loop: start=0, step=1, limit=10
  $region2: #{deconv3d_skip_forward.3} parent=0 // loop_pre_header
    _
  $region3: #{deconv3d_skip_forward.3} parent=0 // loop_header
    %s11 = sphi 0, %s15
    %p12 = scmp.ge.s32.totalorder %s11, 10
    %s18 = sphi 0, %s30
    %s19 = sphi 0, %s26
    %s20 = sphi 0, %s18
    %s21 = sphi 0, %s19
    %s22 = sphi 0, %s20
    %s23 = sphi 0, %s21
    %s35 = sphi 0, %s37
    %s38 = sphi 0, %s35
    %s39 = sphi 0, %s38
    %s55 = sphi 0, %s39
    %s59 = sphi 0, %s59
    %s61 = sphi 0, %s59
    %s62 = sphi 0, %s61
    %s76 = sphi 0, %s62
    %s80 = sphi 0, %s80
    %s82 = sphi 0, %s80
    %s83 = sphi 0, %s82
    %s97 = sphi 0, %s83
    %s101 = sphi 0, %s101
    %s103 = sphi 0, %s101
    %s104 = sphi 0, %s103
    %s118 = sphi 0, %s104
    %s122 = sphi 0, %s122
    %s124 = sphi 0, %s122
    %s125 = sphi 0, %s124
    %s139 = sphi 0, %s125
    %s147 = sphi 0, %s149
    %s150 = sphi 0, %s147
    %s151 = sphi 0, %s150
    %s167 = sphi 0, %s151
  $region4: #{deconv3d_skip_forward.3} parent=0 // loop_header_branch
    %14 = sbr.rel (%p12) target = $region8
  $region5: #{deconv3d_skip_forward.3} parent=0 // loop_body
    %s16 = ssub.s32 %s11, 1
    %s17 = ssub.s32 %s11, 2
    %s24 = sadd.s32 1, %s19
    %p25 = scmp.ge.s32.totalorder %s24, 1
    %s26 = scalar_select %p25, 0, %s24
    %s27 = sadd.s32 1, %s18
    %s28 = scalar_select %p25, %s27, %s18
    %p29 = scmp.ge.s32.totalorder %s28, 8
    %s30 = scalar_select %p29, 0, %s28
    %s31 = ssub.s32 %s18, %s30
    %s32 = ssub.s32 %s19, %s26
    %s33 = sor.u32 %s31, %s32
    %p34 = scmp.eq.s32.totalorder %s33, 0
    %s36 = sadd.s32 %s35, 1
    %s37 = scalar_select %p34, %s35, %s36
    %p40 = pneg %p34
    %p41 = scmp.eq.s32.totalorder %s11, 7
    %p42 = por %p40, %p41
    %p43 = scmp.ne.s32.totalorder %s35, %s38
    %p44 = scmp.eq.s32.totalorder %s11, 0
    %p45 = por %p43, %p44
    %p46 = scmp.ne.s32.totalorder %s35, %s38
    %p47 = scmp.eq.s32.totalorder %s16, 7
    %p48 = por %p46, %p47
    %p49 = scmp.ne.s32.totalorder %s38, %s39
    %p50 = scmp.eq.s32.totalorder %s16, 0
    %p51 = por %p49, %p50
    %p52 = scmp.ne.s32.totalorder %s38, %s39
    %p53 = scmp.eq.s32.totalorder %s17, 7
    %p54 = por %p52, %p53
    %p56 = scmp.ne.s32.totalorder %s39, %s55
    %p57 = scmp.eq.s32.totalorder %s17, 0
    %p58 = por %p56, %p57
    %s60 = sadd.s32 %s59, 1
    %p63 = scmp.eq.s32.totalorder %s11, 7
    %p64 = scmp.ne.s32.totalorder %s59, %s61
    %p65 = scmp.eq.s32.totalorder %s11, 0
    %p66 = por %p64, %p65
    %p67 = scmp.ne.s32.totalorder %s59, %s61
    %p68 = scmp.eq.s32.totalorder %s16, 7
    %p69 = por %p67, %p68
    %p70 = scmp.ne.s32.totalorder %s61, %s62
    %p71 = scmp.eq.s32.totalorder %s16, 0
    %p72 = por %p70, %p71
    %p73 = scmp.ne.s32.totalorder %s61, %s62
    %p74 = scmp.eq.s32.totalorder %s17, 7
    %p75 = por %p73, %p74
    %p77 = scmp.ne.s32.totalorder %s62, %s76
    %p78 = scmp.eq.s32.totalorder %s17, 0
    %p79 = por %p77, %p78
    %s81 = sadd.s32 %s80, 1
    %p84 = scmp.eq.s32.totalorder %s11, 7
    %p85 = scmp.ne.s32.totalorder %s80, %s82
    %p86 = scmp.eq.s32.totalorder %s11, 0
    %p87 = por %p85, %p86
    %p88 = scmp.ne.s32.totalorder %s80, %s82
    %p89 = scmp.eq.s32.totalorder %s16, 7
    %p90 = por %p88, %p89
    %p91 = scmp.ne.s32.totalorder %s82, %s83
    %p92 = scmp.eq.s32.totalorder %s16, 0
    %p93 = por %p91, %p92
    %p94 = scmp.ne.s32.totalorder %s82, %s83
    %p95 = scmp.eq.s32.totalorder %s17, 7
    %p96 = por %p94, %p95
    %p98 = scmp.ne.s32.totalorder %s83, %s97
    %p99 = scmp.eq.s32.totalorder %s17, 0
    %p100 = por %p98, %p99
    %s102 = sadd.s32 %s101, 1
    %p105 = scmp.eq.s32.totalorder %s11, 7
    %p106 = scmp.ne.s32.totalorder %s101, %s103
    %p107 = scmp.eq.s32.totalorder %s11, 0
    %p108 = por %p106, %p107
    %p109 = scmp.ne.s32.totalorder %s101, %s103
    %p110 = scmp.eq.s32.totalorder %s16, 7
    %p111 = por %p109, %p110
    %p112 = scmp.ne.s32.totalorder %s103, %s104
    %p113 = scmp.eq.s32.totalorder %s16, 0
    %p114 = por %p112, %p113
    %p115 = scmp.ne.s32.totalorder %s103, %s104
    %p116 = scmp.eq.s32.totalorder %s17, 7
    %p117 = por %p115, %p116
    %p119 = scmp.ne.s32.totalorder %s104, %s118
    %p120 = scmp.eq.s32.totalorder %s17, 0
    %p121 = por %p119, %p120
    %s123 = sadd.s32 %s122, 1
    %p126 = scmp.eq.s32.totalorder %s11, 7
    %p127 = scmp.ne.s32.totalorder %s122, %s124
    %p128 = scmp.eq.s32.totalorder %s11, 0
    %p129 = por %p127, %p128
    %p130 = scmp.ne.s32.totalorder %s122, %s124
    %p131 = scmp.eq.s32.totalorder %s16, 7
    %p132 = por %p130, %p131
    %p133 = scmp.ne.s32.totalorder %s124, %s125
    %p134 = scmp.eq.s32.totalorder %s16, 0
    %p135 = por %p133, %p134
    %p136 = scmp.ne.s32.totalorder %s124, %s125
    %p137 = scmp.eq.s32.totalorder %s17, 7
    %p138 = por %p136, %p137
    %p140 = scmp.ne.s32.totalorder %s125, %s139
    %p141 = scmp.eq.s32.totalorder %s17, 0
    %p142 = por %p140, %p141
    %s143 = ssub.s32 %s18, %s30
    %s144 = ssub.s32 %s19, %s26
    %s145 = sor.u32 %s143, %s144
    %p146 = scmp.eq.s32.totalorder %s145, 0
    %s148 = sadd.s32 %s147, 1
    %s149 = scalar_select %p146, %s147, %s148
    %p152 = pneg %p146
    %p153 = scmp.eq.s32.totalorder %s11, 7
    %p154 = por %p152, %p153
    %p155 = scmp.ne.s32.totalorder %s147, %s150
    %p156 = scmp.eq.s32.totalorder %s11, 0
    %p157 = por %p155, %p156
    %p158 = scmp.ne.s32.totalorder %s147, %s150
    %p159 = scmp.eq.s32.totalorder %s16, 7
    %p160 = por %p158, %p159
    %p161 = scmp.ne.s32.totalorder %s150, %s151
    %p162 = scmp.eq.s32.totalorder %s16, 0
    %p163 = por %p161, %p162
    %p164 = scmp.ne.s32.totalorder %s150, %s151
    %p165 = scmp.eq.s32.totalorder %s17, 7
    %p166 = por %p164, %p165
    %p168 = scmp.ne.s32.totalorder %s151, %s167
    %p169 = scmp.eq.s32.totalorder %s17, 0
    %p170 = por %p168, %p169
    %p171 = scmp.le.s32.totalorder 1, %s11
    %p172 = scmp.lt.s32.totalorder %s11, 9
    %p173 = pnand %p171, %p172
    %p174 = pneg %p173
    // Predicated region
    $region9: #{deconv3d_skip_forward.3} parent=5 // pred_check
      _
    $region10: #{deconv3d_skip_forward.3} parent=5 // pred_check_branch
      %176 = sbr.rel (%p173) target = $region12
    $region11: #{deconv3d_skip_forward.3} parent=5 // pred_region
      %s177 = ssub.s32 %s11, 1
      // Predicated region
      $region13: #{deconv3d_skip_forward.3} parent=11 // pred_check
        %p178 = pneg %p72
      $region14: #{deconv3d_skip_forward.3} parent=11 // pred_check_branch
        %180 = sbr.rel (%p178) target = $region16
      $region15: #{deconv3d_skip_forward.3} parent=11 // pred_region
        _
      $region16: #{deconv3d_skip_forward.3} parent=11 // pred_fallthru
        _
      // Predicated region
      $region17: #{deconv3d_skip_forward.3} parent=11 // pred_check
        %p181 = pneg %p93
      $region18: #{deconv3d_skip_forward.3} parent=11 // pred_check_branch
        %183 = sbr.rel (%p181) target = $region20
      $region19: #{deconv3d_skip_forward.3} parent=11 // pred_region
        _
      $region20: #{deconv3d_skip_forward.3} parent=11 // pred_fallthru
        _
      // Predicated region
      $region21: #{deconv3d_skip_forward.3} parent=11 // pred_check
        %p184 = pneg %p114
      $region22: #{deconv3d_skip_forward.3} parent=11 // pred_check_branch
        %186 = sbr.rel (%p184) target = $region24
      $region23: #{deconv3d_skip_forward.3} parent=11 // pred_region
        _
      $region24: #{deconv3d_skip_forward.3} parent=11 // pred_fallthru
        _
      // Predicated region
      $region25: #{deconv3d_skip_forward.3} parent=11 // pred_check
        %p187 = pneg %p135
      $region26: #{deconv3d_skip_forward.3} parent=11 // pred_check_branch
        %189 = sbr.rel (%p187) target = $region28
      $region27: #{deconv3d_skip_forward.3} parent=11 // pred_region
        _
      $region28: #{deconv3d_skip_forward.3} parent=11 // pred_fallthru
        _
    $region12: #{deconv3d_skip_forward.3} parent=5 // pred_fallthru
      _
    %p190 = scmp.lt.s32.totalorder %s11, 8
    // Predicated region
    $region29: #{deconv3d_skip_forward.3} parent=5 // pred_check
      %p191 = pneg %p190
    $region30: #{deconv3d_skip_forward.3} parent=5 // pred_check_branch
      %193 = sbr.rel (%p191) target = $region32
    $region31: #{deconv3d_skip_forward.3} parent=5 // pred_region
      // Predicated region
      $region33: #{deconv3d_skip_forward.3} parent=31 // pred_check
        %p194 = pneg %p45
      $region34: #{deconv3d_skip_forward.3} parent=31 // pred_check_branch
        %196 = sbr.rel (%p194) target = $region36
      $region35: #{deconv3d_skip_forward.3} parent=31 // pred_region
        %s197 = smul.u32 16, %s19
        %p198 = scmp.lt.s32.totalorder %s18, 7
        %s199 = scalar_select %p198, %s18, 7
        %p200 = scmp.lt.s32.totalorder %s197, 15
        %s201 = scalar_select %p200, %s197, 15
        %s202 = smul.addr %s199, 16
        %s203 = sadd.s32 %s201, %s202
        %s204 = smul.addr %s203, 8
        %s205 = scalar_lea.vmem %s0, %s204
        %s206 = smul.u32 16, %s19
      $region36: #{deconv3d_skip_forward.3} parent=31 // pred_fallthru
        _
    $region32: #{deconv3d_skip_forward.3} parent=5 // pred_fallthru
      _
    %p207 = scmp.le.s32.totalorder 1, %s11
    %p208 = scmp.lt.s32.totalorder %s11, 9
    %p209 = pnand %p207, %p208
    %p210 = pneg %p209
    // Predicated region
    $region37: #{deconv3d_skip_forward.3} parent=5 // pred_check
      _
    $region38: #{deconv3d_skip_forward.3} parent=5 // pred_check_branch
      %212 = sbr.rel (%p209) target = $region40
    $region39: #{deconv3d_skip_forward.3} parent=5 // pred_region
      %s213 = ssub.s32 %s11, 1
      %s214 = smul.u32 16, %s21
      %p215 = scmp.lt.s32.totalorder %s20, 7
      %s216 = scalar_select %p215, %s20, 7
      %p217 = scmp.lt.s32.totalorder %s214, 15
      %s218 = scalar_select %p217, %s214, 15
      %s219 = smul.addr %s216, 16
      %s220 = sadd.s32 %s218, %s219
      %s221 = smul.addr %s220, 8
      %s222 = scalar_lea.vmem %s0, %s221
      %p223 = pneg %p51
      %p224 = pneg %p48
      %p225 = pneg %p72
      %p226 = pneg %p69
      %p227 = pneg %p93
      %p228 = pneg %p90
      %p229 = pneg %p114
      %p230 = pneg %p111
      %p231 = pneg %p135
      %p232 = pneg %p132
      %p233 = pneg %p163
      %p234 = pneg %p160
      %s235 = smul.u32 16, %s21
      %p236 = scmp.lt.s32.totalorder %s20, 7
      %s237 = scalar_select %p236, %s20, 7
      %p238 = scmp.lt.s32.totalorder %s235, 15
      %s239 = scalar_select %p238, %s235, 15
      %s240 = smul.addr %s237, 16
      %s241 = sadd.s32 %s239, %s240
      %s242 = smul.addr %s241, 8
      %s243 = scalar_lea.vmem %s5, %s242
      %s244 = smul.u32 16, %s21
      %p245 = scmp.lt.s32.totalorder %s20, 7
      %s246 = scalar_select %p245, %s20, 7
      %p247 = scmp.lt.s32.totalorder %s244, 15
      %s248 = scalar_select %p247, %s244, 15
      %s249 = smul.addr %s246, 16
      %s250 = sadd.s32 %s248, %s249
      %s251 = smul.addr %s250, 8
      %s252 = scalar_lea.vmem %s0, %s251
      %s253 = smul.u32 16, %s21
      %s254 = smul.u32 16, %s21
      %p255 = scmp.lt.s32.totalorder %s20, 7
      %s256 = scalar_select %p255, %s20, 7
      %p257 = scmp.lt.s32.totalorder %s254, 15
      %s258 = scalar_select %p257, %s254, 15
      %s259 = smul.addr %s256, 16
      %s260 = sadd.s32 %s258, %s259
      %s261 = smul.addr %s260, 8
      %s262 = scalar_lea.vmem %s5, %s261
      %s263 = smul.u32 16, %s21
      %v264 = vld [vmem:[%s252] sm:$0xff]
      %v265 = vld [vmem:[%s252 + $0x8] sm:$0xff]
      %v266 = vld [vmem:[%s252 + $0x10] sm:$0xff]
      %v267 = vld [vmem:[%s252 + $0x18] sm:$0xff]
      %v268 = vld [vmem:[%s252 + $0x20] sm:$0xff]
      %v269 = vld [vmem:[%s252 + $0x28] sm:$0xff]
      %v270 = vld [vmem:[%s252 + $0x30] sm:$0xff]
      %v271 = vld [vmem:[%s252 + $0x38] sm:$0xff]
      %v272 = vld [vmem:[%s252 + $0x40] sm:$0xff]
      %v273 = vld [vmem:[%s252 + $0x48] sm:$0xff]
      %v274 = vld [vmem:[%s252 + $0x50] sm:$0xff]
      %v275 = vld [vmem:[%s252 + $0x58] sm:$0xff]
      %v276 = vld [vmem:[%s252 + $0x60] sm:$0xff]
      %v277 = vld [vmem:[%s252 + $0x68] sm:$0xff]
      %v278 = vld [vmem:[%s252 + $0x70] sm:$0xff]
      %v279 = vld [vmem:[%s252 + $0x78] sm:$0xff]
      %v280 = vld [vmem:[%s1] sm:$0x1]
      %v281 = vmul.f32 %v280, 0.0009765625
      %v282 = vld [vmem:[%s2] sm:$0x1]
      %v283 = vmul.f32 %v282, 0.0009765625
      %v284 = vmul.f32 %v281, %v281
      %v285 = vsub.f32 %v283, %v284
      %v286 = vmax.f32 %v285, 0.0
      %v287 = vadd.f32 %v286, 1e-05
      %v288 = vrsqrt.pop %v287
      %v289 = vld [vmem:[%s3] sm:$0x1]
      %v290 = vmul.f32 %v288, %v289
      %v292 = vlaneseq
      %v293 = vshrl.u32 %v292, 7
      %v294 = vsub.s32 0, %v293
      %v295 = vrot.slane %v281, %v294
      %v297 = vsub.f32 %v264, %v295
      %v298 = vsub.f32 %v265, %v295
      %v299 = vsub.f32 %v266, %v295
      %v300 = vsub.f32 %v267, %v295
      %v301 = vsub.f32 %v268, %v295
      %v302 = vsub.f32 %v269, %v295
      %v303 = vsub.f32 %v270, %v295
      %v304 = vsub.f32 %v271, %v295
      %v305 = vsub.f32 %v272, %v295
      %v306 = vsub.f32 %v273, %v295
      %v307 = vsub.f32 %v274, %v295
      %v308 = vsub.f32 %v275, %v295
      %v309 = vsub.f32 %v276, %v295
      %v310 = vsub.f32 %v277, %v295
      %v311 = vsub.f32 %v278, %v295
      %v312 = vsub.f32 %v279, %v295
      %v314 = vlaneseq
      %v315 = vshrl.u32 %v314, 7
      %v316 = vsub.s32 0, %v315
      %v317 = vrot.slane %v290, %v316
      %v319 = vmul.f32 %v297, %v317
      %v320 = vmul.f32 %v298, %v317
      %v321 = vmul.f32 %v299, %v317
      %v322 = vmul.f32 %v300, %v317
      %v323 = vmul.f32 %v301, %v317
      %v324 = vmul.f32 %v302, %v317
      %v325 = vmul.f32 %v303, %v317
      %v326 = vmul.f32 %v304, %v317
      %v327 = vmul.f32 %v305, %v317
      %v328 = vmul.f32 %v306, %v317
      %v329 = vmul.f32 %v307, %v317
      %v330 = vmul.f32 %v308, %v317
      %v331 = vmul.f32 %v309, %v317
      %v332 = vmul.f32 %v310, %v317
      %v333 = vmul.f32 %v311, %v317
      %v334 = vmul.f32 %v312, %v317
      %v335 = vld [vmem:[%s4] sm:$0x1]
      %v337 = vlaneseq
      %v338 = vshrl.u32 %v337, 7
      %v339 = vsub.s32 0, %v338
      %v340 = vrot.slane %v335, %v339
      %v342 = vadd.f32 %v319, %v340
      %v343 = vadd.f32 %v320, %v340
      %v344 = vadd.f32 %v321, %v340
      %v345 = vadd.f32 %v322, %v340
      %v346 = vadd.f32 %v323, %v340
      %v347 = vadd.f32 %v324, %v340
      %v348 = vadd.f32 %v325, %v340
      %v349 = vadd.f32 %v326, %v340
      %v350 = vadd.f32 %v327, %v340
      %v351 = vadd.f32 %v328, %v340
      %v352 = vadd.f32 %v329, %v340
      %v353 = vadd.f32 %v330, %v340
      %v354 = vadd.f32 %v331, %v340
      %v355 = vadd.f32 %v332, %v340
      %v356 = vadd.f32 %v333, %v340
      %v357 = vadd.f32 %v334, %v340
      %vm358 = vcmp.gt.f32.partialorder %v342, 0.0
      %vm359 = vcmp.gt.f32.partialorder %v343, 0.0
      %vm360 = vcmp.gt.f32.partialorder %v344, 0.0
      %vm361 = vcmp.gt.f32.partialorder %v345, 0.0
      %vm362 = vcmp.gt.f32.partialorder %v346, 0.0
      %vm363 = vcmp.gt.f32.partialorder %v347, 0.0
      %vm364 = vcmp.gt.f32.partialorder %v348, 0.0
      %vm365 = vcmp.gt.f32.partialorder %v349, 0.0
      %vm366 = vcmp.gt.f32.partialorder %v350, 0.0
      %vm367 = vcmp.gt.f32.partialorder %v351, 0.0
      %vm368 = vcmp.gt.f32.partialorder %v352, 0.0
      %vm369 = vcmp.gt.f32.partialorder %v353, 0.0
      %vm370 = vcmp.gt.f32.partialorder %v354, 0.0
      %vm371 = vcmp.gt.f32.partialorder %v355, 0.0
      %vm372 = vcmp.gt.f32.partialorder %v356, 0.0
      %vm373 = vcmp.gt.f32.partialorder %v357, 0.0
      %v374 = vmul.f32 %v342, 0.01
      %v375 = vmul.f32 %v343, 0.01
      %v376 = vmul.f32 %v344, 0.01
      %v377 = vmul.f32 %v345, 0.01
      %v378 = vmul.f32 %v346, 0.01
      %v379 = vmul.f32 %v347, 0.01
      %v380 = vmul.f32 %v348, 0.01
      %v381 = vmul.f32 %v349, 0.01
      %v382 = vmul.f32 %v350, 0.01
      %v383 = vmul.f32 %v351, 0.01
      %v384 = vmul.f32 %v352, 0.01
      %v385 = vmul.f32 %v353, 0.01
      %v386 = vmul.f32 %v354, 0.01
      %v387 = vmul.f32 %v355, 0.01
      %v388 = vmul.f32 %v356, 0.01
      %v389 = vmul.f32 %v357, 0.01
      %v390 = vsel %vm358, %v342, %v374
      %v391 = vsel %vm359, %v343, %v375
      %v392 = vsel %vm360, %v344, %v376
      %v393 = vsel %vm361, %v345, %v377
      %v394 = vsel %vm362, %v346, %v378
      %v395 = vsel %vm363, %v347, %v379
      %v396 = vsel %vm364, %v348, %v380
      %v397 = vsel %vm365, %v349, %v381
      %v398 = vsel %vm366, %v350, %v382
      %v399 = vsel %vm367, %v351, %v383
      %v400 = vsel %vm368, %v352, %v384
      %v401 = vsel %vm369, %v353, %v385
      %v402 = vsel %vm370, %v354, %v386
      %v403 = vsel %vm371, %v355, %v387
      %v404 = vsel %vm372, %v356, %v388
      %v405 = vsel %vm373, %v357, %v389
      %406 = vst [vmem:[%s262] sm:$0xff] %v390
      %407 = vst [vmem:[%s262 + $0x8] sm:$0xff] %v391
      %408 = vst [vmem:[%s262 + $0x10] sm:$0xff] %v392
      %409 = vst [vmem:[%s262 + $0x18] sm:$0xff] %v393
      %410 = vst [vmem:[%s262 + $0x20] sm:$0xff] %v394
      %411 = vst [vmem:[%s262 + $0x28] sm:$0xff] %v395
      %412 = vst [vmem:[%s262 + $0x30] sm:$0xff] %v396
      %413 = vst [vmem:[%s262 + $0x38] sm:$0xff] %v397
      %414 = vst [vmem:[%s262 + $0x40] sm:$0xff] %v398
      %415 = vst [vmem:[%s262 + $0x48] sm:$0xff] %v399
      %416 = vst [vmem:[%s262 + $0x50] sm:$0xff] %v400
      %417 = vst [vmem:[%s262 + $0x58] sm:$0xff] %v401
      %418 = vst [vmem:[%s262 + $0x60] sm:$0xff] %v402
      %419 = vst [vmem:[%s262 + $0x68] sm:$0xff] %v403
      %420 = vst [vmem:[%s262 + $0x70] sm:$0xff] %v404
      %421 = vst [vmem:[%s262 + $0x78] sm:$0xff] %v405
      %s422 = smul.u32 16, %s21
      %p423 = scmp.lt.s32.totalorder %s20, 7
      %s424 = scalar_select %p423, %s20, 7
      %p425 = scmp.lt.s32.totalorder %s422, 15
      %s426 = scalar_select %p425, %s422, 15
      %s427 = smul.addr %s424, 16
      %s428 = sadd.s32 %s426, %s427
      %s429 = smul.addr %s428, 8
      %s430 = scalar_lea.vmem %s5, %s429
      // Predicated region
      $region41: #{deconv3d_skip_forward.3} parent=39 // pred_check
        %p431 = pneg %p160
      $region42: #{deconv3d_skip_forward.3} parent=39 // pred_check_branch
        %433 = sbr.rel (%p431) target = $region44
      $region43: #{deconv3d_skip_forward.3} parent=39 // pred_region
        %s434 = smul.u32 16, %s21
      $region44: #{deconv3d_skip_forward.3} parent=39 // pred_fallthru
        _
    $region40: #{deconv3d_skip_forward.3} parent=5 // pred_fallthru
      _
    %p435 = scmp.le.s32.totalorder 2, %s11
    // Predicated region
    $region45: #{deconv3d_skip_forward.3} parent=5 // pred_check
      %p436 = pneg %p435
    $region46: #{deconv3d_skip_forward.3} parent=5 // pred_check_branch
      %438 = sbr.rel (%p436) target = $region48
    $region47: #{deconv3d_skip_forward.3} parent=5 // pred_region
      %s439 = ssub.s32 %s11, 2
      // Predicated region
      $region49: #{deconv3d_skip_forward.3} parent=47 // pred_check
        %p440 = pneg %p166
      $region50: #{deconv3d_skip_forward.3} parent=47 // pred_check_branch
        %442 = sbr.rel (%p440) target = $region52
      $region51: #{deconv3d_skip_forward.3} parent=47 // pred_region
        %s443 = smul.u32 16, %s23
        %p444 = scmp.lt.s32.totalorder %s22, 7
        %s445 = scalar_select %p444, %s22, 7
        %p446 = scmp.lt.s32.totalorder %s443, 15
        %s447 = scalar_select %p446, %s443, 15
        %s448 = smul.addr %s445, 16
        %s449 = sadd.s32 %s447, %s448
        %s450 = smul.addr %s449, 8
        %s451 = scalar_lea.vmem %s5, %s450
      $region52: #{deconv3d_skip_forward.3} parent=47 // pred_fallthru
        _
    $region48: #{deconv3d_skip_forward.3} parent=5 // pred_fallthru
      _
  $region6: #{deconv3d_skip_forward.3} parent=0 // loop_footer
    %s15 = sadd.s32 1, %s11
  $region7: #{deconv3d_skip_forward.3} parent=0 // loop_footer_branch
    %10 = sbr.rel target = $region3
  $region8: #{deconv3d_skip_forward.3} parent=0 // loop_exit
    _

// kernel: deconv3d_skip_forward.2
$region0: #{deconv3d_skip_forward.2}
  #allocation0 [shape = 'u32[]', space=smem, size = 0x4, offset = 0x4, fixed_abs, tag = 'smem constant byte address 0x4 - core index']
  #allocation1 [shape = 'u32[144,128]{1,0:T(1,128)}', space=vmem, size = 0x12000, scoped, tag = 'internal scratch']
  #allocation2 [shape = 'f32[1,128]{1,0:T(1,128)}', space=vmem, size = 0x200, scoped, tag = 'scratch operand']
  #allocation3 [shape = 'f32[1,128]{1,0:T(1,128)}', space=vmem, size = 0x200, scoped, tag = 'scratch operand']
  %s0 = inlined_call_operand.vmem [shape: bf16[8,128,64], index: 0, kind: input, shape index: {}]
  %s1 = inlined_call_operand.vmem [shape: bf16[8,64,128], index: 1, kind: input, shape index: {}]
  %s2 = inlined_call_operand.vmem [shape: f32[8,128,128], index: 2, kind: output, shape index: {0}]
  %s3 = inlined_call_operand.vmem [shape: f32[1,128], index: 3, kind: output, shape index: {1}]
  %s4 = inlined_call_operand.vmem [shape: f32[1,128], index: 4, kind: output, shape index: {2}]
  %5 = xla_tuple %s2, %s3, %s4
  %s6 = sld [smem:[#allocation0]]
  $region61: #{deconv3d_skip_forward.2} parent=0
    _
  %s8 = ssub.s32 1, %s6
  %s9 = scalar_select 0, %s8, %s6
  loop: start=0, step=1, limit=10
  $region2: #{deconv3d_skip_forward.2} parent=0 // loop_pre_header
    _
  $region3: #{deconv3d_skip_forward.2} parent=0 // loop_header
    %s11 = sphi 0, %s15
    %p12 = scmp.ge.s32.totalorder %s11, 10
    %s18 = sphi 0, %s30
    %s19 = sphi 0, %s26
    %s20 = sphi 0, %s18
    %s21 = sphi 0, %s19
    %s22 = sphi 0, %s20
    %s23 = sphi 0, %s21
    %s35 = sphi 0, %s37
    %s38 = sphi 0, %s35
    %s39 = sphi 0, %s38
    %s55 = sphi 0, %s39
    %s61 = sphi 0, %s63
    %s64 = sphi 0, %s61
    %s65 = sphi 0, %s64
    %s81 = sphi 0, %s65
    %s89 = sphi 0, %s91
    %s92 = sphi 0, %s89
    %s93 = sphi 0, %s92
    %s109 = sphi 0, %s93
    %s113 = sphi 0, %s113
    %s115 = sphi 0, %s113
    %s116 = sphi 0, %s115
    %s130 = sphi 0, %s116
    %s134 = sphi 0, %s134
    %s136 = sphi 0, %s134
    %s137 = sphi 0, %s136
    %s151 = sphi 0, %s137
  $region4: #{deconv3d_skip_forward.2} parent=0 // loop_header_branch
    %14 = sbr.rel (%p12) target = $region8
  $region5: #{deconv3d_skip_forward.2} parent=0 // loop_body
    %s16 = ssub.s32 %s11, 1
    %s17 = ssub.s32 %s11, 2
    %s24 = sadd.s32 1, %s19
    %p25 = scmp.ge.s32.totalorder %s24, 1
    %s26 = scalar_select %p25, 0, %s24
    %s27 = sadd.s32 1, %s18
    %s28 = scalar_select %p25, %s27, %s18
    %p29 = scmp.ge.s32.totalorder %s28, 8
    %s30 = scalar_select %p29, 0, %s28
    %s31 = ssub.s32 %s18, %s30
    %s32 = ssub.s32 %s19, %s26
    %s33 = sor.u32 %s31, %s32
    %p34 = scmp.eq.s32.totalorder %s33, 0
    %s36 = sadd.s32 %s35, 1
    %s37 = scalar_select %p34, %s35, %s36
    %p40 = pneg %p34
    %p41 = scmp.eq.s32.totalorder %s11, 7
    %p42 = por %p40, %p41
    %p43 = scmp.ne.s32.totalorder %s35, %s38
    %p44 = scmp.eq.s32.totalorder %s11, 0
    %p45 = por %p43, %p44
    %p46 = scmp.ne.s32.totalorder %s35, %s38
    %p47 = scmp.eq.s32.totalorder %s16, 7
    %p48 = por %p46, %p47
    %p49 = scmp.ne.s32.totalorder %s38, %s39
    %p50 = scmp.eq.s32.totalorder %s16, 0
    %p51 = por %p49, %p50
    %p52 = scmp.ne.s32.totalorder %s38, %s39
    %p53 = scmp.eq.s32.totalorder %s17, 7
    %p54 = por %p52, %p53
    %p56 = scmp.ne.s32.totalorder %s39, %s55
    %p57 = scmp.eq.s32.totalorder %s17, 0
    %p58 = por %p56, %p57
    %s59 = ssub.s32 %s18, %s30
    %p60 = scmp.eq.s32.totalorder %s59, 0
    %s62 = sadd.s32 %s61, 1
    %s63 = scalar_select %p60, %s61, %s62
    %p66 = pneg %p60
    %p67 = scmp.eq.s32.totalorder %s11, 7
    %p68 = por %p66, %p67
    %p69 = scmp.ne.s32.totalorder %s61, %s64
    %p70 = scmp.eq.s32.totalorder %s11, 0
    %p71 = por %p69, %p70
    %p72 = scmp.ne.s32.totalorder %s61, %s64
    %p73 = scmp.eq.s32.totalorder %s16, 7
    %p74 = por %p72, %p73
    %p75 = scmp.ne.s32.totalorder %s64, %s65
    %p76 = scmp.eq.s32.totalorder %s16, 0
    %p77 = por %p75, %p76
    %p78 = scmp.ne.s32.totalorder %s64, %s65
    %p79 = scmp.eq.s32.totalorder %s17, 7
    %p80 = por %p78, %p79
    %p82 = scmp.ne.s32.totalorder %s65, %s81
    %p83 = scmp.eq.s32.totalorder %s17, 0
    %p84 = por %p82, %p83
    %s85 = ssub.s32 %s18, %s30
    %s86 = ssub.s32 %s19, %s26
    %s87 = sor.u32 %s85, %s86
    %p88 = scmp.eq.s32.totalorder %s87, 0
    %s90 = sadd.s32 %s89, 1
    %s91 = scalar_select %p88, %s89, %s90
    %p94 = pneg %p88
    %p95 = scmp.eq.s32.totalorder %s11, 7
    %p96 = por %p94, %p95
    %p97 = scmp.ne.s32.totalorder %s89, %s92
    %p98 = scmp.eq.s32.totalorder %s11, 0
    %p99 = por %p97, %p98
    %p100 = scmp.ne.s32.totalorder %s89, %s92
    %p101 = scmp.eq.s32.totalorder %s16, 7
    %p102 = por %p100, %p101
    %p103 = scmp.ne.s32.totalorder %s92, %s93
    %p104 = scmp.eq.s32.totalorder %s16, 0
    %p105 = por %p103, %p104
    %p106 = scmp.ne.s32.totalorder %s92, %s93
    %p107 = scmp.eq.s32.totalorder %s17, 7
    %p108 = por %p106, %p107
    %p110 = scmp.ne.s32.totalorder %s93, %s109
    %p111 = scmp.eq.s32.totalorder %s17, 0
    %p112 = por %p110, %p111
    %s114 = sadd.s32 %s113, 1
    %p117 = scmp.eq.s32.totalorder %s11, 7
    %p118 = scmp.ne.s32.totalorder %s113, %s115
    %p119 = scmp.eq.s32.totalorder %s11, 0
    %p120 = por %p118, %p119
    %p121 = scmp.ne.s32.totalorder %s113, %s115
    %p122 = scmp.eq.s32.totalorder %s16, 7
    %p123 = por %p121, %p122
    %p124 = scmp.ne.s32.totalorder %s115, %s116
    %p125 = scmp.eq.s32.totalorder %s16, 0
    %p126 = por %p124, %p125
    %p127 = scmp.ne.s32.totalorder %s115, %s116
    %p128 = scmp.eq.s32.totalorder %s17, 7
    %p129 = por %p127, %p128
    %p131 = scmp.ne.s32.totalorder %s116, %s130
    %p132 = scmp.eq.s32.totalorder %s17, 0
    %p133 = por %p131, %p132
    %s135 = sadd.s32 %s134, 1
    %p138 = scmp.eq.s32.totalorder %s11, 7
    %p139 = scmp.ne.s32.totalorder %s134, %s136
    %p140 = scmp.eq.s32.totalorder %s11, 0
    %p141 = por %p139, %p140
    %p142 = scmp.ne.s32.totalorder %s134, %s136
    %p143 = scmp.eq.s32.totalorder %s16, 7
    %p144 = por %p142, %p143
    %p145 = scmp.ne.s32.totalorder %s136, %s137
    %p146 = scmp.eq.s32.totalorder %s16, 0
    %p147 = por %p145, %p146
    %p148 = scmp.ne.s32.totalorder %s136, %s137
    %p149 = scmp.eq.s32.totalorder %s17, 7
    %p150 = por %p148, %p149
    %p152 = scmp.ne.s32.totalorder %s137, %s151
    %p153 = scmp.eq.s32.totalorder %s17, 0
    %p154 = por %p152, %p153
    %p155 = scmp.le.s32.totalorder 1, %s11
    %p156 = scmp.lt.s32.totalorder %s11, 9
    %p157 = pnand %p155, %p156
    %p158 = pneg %p157
    // Predicated region
    $region9: #{deconv3d_skip_forward.2} parent=5 // pred_check
      _
    $region10: #{deconv3d_skip_forward.2} parent=5 // pred_check_branch
      %160 = sbr.rel (%p157) target = $region12
    $region11: #{deconv3d_skip_forward.2} parent=5 // pred_region
      %s161 = ssub.s32 %s11, 1
    $region12: #{deconv3d_skip_forward.2} parent=5 // pred_fallthru
      _
    %p162 = scmp.lt.s32.totalorder %s11, 8
    // Predicated region
    $region13: #{deconv3d_skip_forward.2} parent=5 // pred_check
      %p163 = pneg %p162
    $region14: #{deconv3d_skip_forward.2} parent=5 // pred_check_branch
      %165 = sbr.rel (%p163) target = $region16
    $region15: #{deconv3d_skip_forward.2} parent=5 // pred_region
      // Predicated region
      $region17: #{deconv3d_skip_forward.2} parent=15 // pred_check
        %p166 = pneg %p45
      $region18: #{deconv3d_skip_forward.2} parent=15 // pred_check_branch
        %168 = sbr.rel (%p166) target = $region20
      $region19: #{deconv3d_skip_forward.2} parent=15 // pred_region
        %s169 = smul.u32 16, %s19
        %p170 = scmp.lt.s32.totalorder %s18, 7
        %s171 = scalar_select %p170, %s18, 7
        %p172 = scmp.lt.s32.totalorder %s169, 15
        %s173 = scalar_select %p172, %s169, 15
        %s174 = smul.addr %s171, 16
        %s175 = sadd.s32 %s173, %s174
        %s176 = smul.addr %s175, 4
        %s177 = scalar_lea.vmem %s0, %s176
        %s178 = smul.u32 16, %s19
      $region20: #{deconv3d_skip_forward.2} parent=15 // pred_fallthru
        _
      // Predicated region
      $region21: #{deconv3d_skip_forward.2} parent=15 // pred_check
        %p179 = pneg %p71
      $region22: #{deconv3d_skip_forward.2} parent=15 // pred_check_branch
        %181 = sbr.rel (%p179) target = $region24
      $region23: #{deconv3d_skip_forward.2} parent=15 // pred_region
        %p182 = scmp.lt.s32.totalorder %s18, 7
        %s183 = scalar_select %p182, %s18, 7
        %s184 = smul.addr %s183, 8
        %s185 = smul.addr %s184, 4
        %s186 = scalar_lea.vmem %s1, %s185
      $region24: #{deconv3d_skip_forward.2} parent=15 // pred_fallthru
        _
    $region16: #{deconv3d_skip_forward.2} parent=5 // pred_fallthru
      _
    %p187 = scmp.le.s32.totalorder 1, %s11
    %p188 = scmp.lt.s32.totalorder %s11, 9
    %p189 = pnand %p187, %p188
    %p190 = pneg %p189
    // Predicated region
    $region25: #{deconv3d_skip_forward.2} parent=5 // pred_check
      _
    $region26: #{deconv3d_skip_forward.2} parent=5 // pred_check_branch
      %192 = sbr.rel (%p189) target = $region28
    $region27: #{deconv3d_skip_forward.2} parent=5 // pred_region
      %s193 = ssub.s32 %s11, 1
      %s194 = smul.u32 16, %s21
      %p195 = scmp.lt.s32.totalorder %s20, 7
      %s196 = scalar_select %p195, %s20, 7
      %p197 = scmp.lt.s32.totalorder %s194, 15
      %s198 = scalar_select %p197, %s194, 15
      %s199 = smul.addr %s196, 16
      %s200 = sadd.s32 %s198, %s199
      %s201 = smul.addr %s200, 4
      %s202 = scalar_lea.vmem %s0, %s201
      %p203 = pneg %p51
      %p204 = pneg %p48
      %p205 = scmp.lt.s32.totalorder %s20, 7
      %s206 = scalar_select %p205, %s20, 7
      %s207 = smul.addr %s206, 8
      %s208 = smul.addr %s207, 4
      %s209 = scalar_lea.vmem %s1, %s208
      %p210 = pneg %p77
      %p211 = pneg %p74
      %p212 = pneg %p105
      %p213 = pneg %p102
      %s214 = smul.u32 16, %s21
      %p215 = scmp.lt.s32.totalorder %s20, 7
      %s216 = scalar_select %p215, %s20, 7
      %p217 = scmp.lt.s32.totalorder %s214, 15
      %s218 = scalar_select %p217, %s214, 15
      %s219 = smul.addr %s216, 16
      %s220 = sadd.s32 %s218, %s219
      %s221 = smul.addr %s220, 8
      %s222 = scalar_lea.vmem %s2, %s221
      %p223 = pneg %p126
      %p224 = pneg %p123
      %p225 = pneg %p147
      %p226 = pneg %p144
      %s227 = smul.u32 16, %s21
      %p228 = scmp.lt.s32.totalorder %s20, 7
      %s229 = scalar_select %p228, %s20, 7
      %p230 = scmp.lt.s32.totalorder %s227, 15
      %s231 = scalar_select %p230, %s227, 15
      %s232 = smul.addr %s229, 16
      %s233 = sadd.s32 %s231, %s232
      %s234 = smul.addr %s233, 4
      %s235 = scalar_lea.vmem %s0, %s234
      %s236 = smul.u32 16, %s21
      %p237 = scmp.lt.s32.totalorder %s20, 7
      %s238 = scalar_select %p237, %s20, 7
      %s239 = smul.addr %s238, 8
      %s240 = smul.addr %s239, 4
      %s241 = scalar_lea.vmem %s1, %s240
      %s242 = smul.u32 16, %s21
      %p243 = scmp.lt.s32.totalorder %s20, 7
      %s244 = scalar_select %p243, %s20, 7
      %p245 = scmp.lt.s32.totalorder %s242, 15
      %s246 = scalar_select %p245, %s242, 15
      %s247 = smul.addr %s244, 16
      %s248 = sadd.s32 %s246, %s247
      %s249 = smul.addr %s248, 8
      %s250 = scalar_lea.vmem %s2, %s249
      %s251 = smul.u32 16, %s21
      %p253 = scmp.eq.s32.totalorder %s20, 0
      %p254 = scmp.eq.s32.totalorder %s21, 0
      %p255 = pnand %p253, %p254
      %p256 = pneg %p255
      // Predicated region
      $region29: #{deconv3d_skip_forward.2} parent=27 // pred_check
        _
      $region30: #{deconv3d_skip_forward.2} parent=27 // pred_check_branch
        %258 = sbr.rel (%p255) target = $region32
      $region31: #{deconv3d_skip_forward.2} parent=27 // pred_region
        %259 = vst [vmem:[#allocation2] sm:$0x1] 0.0
        %260 = vst [vmem:[#allocation3] sm:$0x1] 0.0
      $region32: #{deconv3d_skip_forward.2} parent=27 // pred_fallthru
        _
      %v261 = vld [vmem:[%s235] sm:$0xf]
      %v262 = vld [vmem:[%s235 + $0x4] sm:$0xf]
      %v263 = vld [vmem:[%s235 + $0x8] sm:$0xf]
      %v264 = vld [vmem:[%s235 + $0xc] sm:$0xf]
      %v265 = vld [vmem:[%s235 + $0x10] sm:$0xf]
      %v266 = vld [vmem:[%s235 + $0x14] sm:$0xf]
      %v267 = vld [vmem:[%s235 + $0x18] sm:$0xf]
      %v268 = vld [vmem:[%s235 + $0x1c] sm:$0xf]
      %v269 = vld [vmem:[%s235 + $0x20] sm:$0xf]
      %v270 = vld [vmem:[%s235 + $0x24] sm:$0xf]
      %v271 = vld [vmem:[%s235 + $0x28] sm:$0xf]
      %v272 = vld [vmem:[%s235 + $0x2c] sm:$0xf]
      %v273 = vld [vmem:[%s235 + $0x30] sm:$0xf]
      %v274 = vld [vmem:[%s235 + $0x34] sm:$0xf]
      %v275 = vld [vmem:[%s235 + $0x38] sm:$0xf]
      %v276 = vld [vmem:[%s235 + $0x3c] sm:$0xf]
      %v277 = vld [vmem:[%s241] sm:$0xf]
      %v278 = vld [vmem:[%s241 + $0x4] sm:$0xf]
      %v279 = vld [vmem:[%s241 + $0x8] sm:$0xf]
      %v280 = vld [vmem:[%s241 + $0xc] sm:$0xf]
      %v281 = vld [vmem:[%s241 + $0x10] sm:$0xf]
      %v282 = vld [vmem:[%s241 + $0x14] sm:$0xf]
      %v283 = vld [vmem:[%s241 + $0x18] sm:$0xf]
      %v284 = vld [vmem:[%s241 + $0x1c] sm:$0xf]
      %v301 = vunpack.c.l.b16 %v261
      %v302 = vunpack.c.l.b16 %v262
      %v303 = vunpack.c.l.b16 %v263
      %v304 = vunpack.c.l.b16 %v264
      %v305 = vunpack.c.l.b16 %v265
      %v306 = vunpack.c.l.b16 %v266
      %v307 = vunpack.c.l.b16 %v267
      %v308 = vunpack.c.l.b16 %v268
      %v309 = vunpack.c.l.b16 %v269
      %v310 = vunpack.c.l.b16 %v270
      %v311 = vunpack.c.l.b16 %v271
      %v312 = vunpack.c.l.b16 %v272
      %v313 = vunpack.c.l.b16 %v273
      %v314 = vunpack.c.l.b16 %v274
      %v315 = vunpack.c.l.b16 %v275
      %v316 = vunpack.c.l.b16 %v276
      %v317 = vpack.c.b16 %v302, %v301
      %v318 = vpack.c.b16 %v304, %v303
      %v319 = vpack.c.b16 %v306, %v305
      %v320 = vpack.c.b16 %v308, %v307
      %v321 = vpack.c.b16 %v310, %v309
      %v322 = vpack.c.b16 %v312, %v311
      %v323 = vpack.c.b16 %v314, %v313
      %v324 = vpack.c.b16 %v316, %v315
      %v333 = vunpack.c.l.b16 %v277
      %v334 = vunpack.c.l.b16 %v278
      %v335 = vunpack.c.l.b16 %v279
      %v336 = vunpack.c.l.b16 %v280
      %v337 = vunpack.c.l.b16 %v281
      %v338 = vunpack.c.l.b16 %v282
      %v339 = vunpack.c.l.b16 %v283
      %v340 = vunpack.c.l.b16 %v284
      %v341 = vpack.c.b16 %v334, %v333
      %v342 = vpack.c.b16 %v336, %v335
      %v343 = vpack.c.b16 %v338, %v337
      %v344 = vpack.c.b16 %v340, %v339
      %vm349 = vcmask 523264
      %v351 = vsel %vm349, %v317, 0
      %v354 = vsel %vm349, %v318, 0
      %v357 = vsel %vm349, %v319, 0
      %v360 = vsel %vm349, %v320, 0
      %v363 = vsel %vm349, %v321, 0
      %v366 = vsel %vm349, %v322, 0
      %v369 = vsel %vm349, %v323, 0
      %v372 = vsel %vm349, %v324, 0
      %374 = vmatprep.subr.bf16.mxu0 0
      %375 = vmatpush1.bf16.msra.mxu0 %v341
      %376 = vmatprep.subr.bf16.mxu0 0
      %377 = vmatpush1.bf16.msra.mxu0 %v342
      %378 = vmatprep.subr.bf16.mxu0 0
      %379 = vmatpush1.bf16.msra.mxu0 %v343
      %380 = vmatprep.subr.bf16.mxu0 0
      %381 = vmatpush1.bf16.msra.mxu0 %v344
      %382 = vmatprep.subr.bf16.mxu0 0
      %383 = vmatpush1.bf16.msra.mxu0 0
      %384 = vmatprep.subr.bf16.mxu0 0
      %385 = vmatpush1.bf16.msra.mxu0 0
      %386 = vmatprep.subr.bf16.mxu0 0
      %387 = vmatpush1.bf16.msra.mxu0 0
      %388 = vmatprep.subr.bf16.mxu0 0
      %389 = vmatpush1.bf16.msra.mxu0 0
      %390 = vmatprep.subr.bf16.mxu0 0
      %391 = vmatpush1.bf16.msra.mxu0 0
      %392 = vmatprep.subr.bf16.mxu0 0
      %393 = vmatpush1.bf16.msra.mxu0 0
      %394 = vmatprep.subr.bf16.mxu0 0
      %395 = vmatpush1.bf16.msra.mxu0 0
      %396 = vmatprep.subr.bf16.mxu0 0
      %397 = vmatpush1.bf16.msra.mxu0 0
      %398 = vmatprep.subr.bf16.mxu0 0
      %399 = vmatpush1.bf16.msra.mxu0 0
      %400 = vmatprep.subr.bf16.mxu0 0
      %401 = vmatpush1.bf16.msra.mxu0 0
      %402 = vmatprep.subr.bf16.mxu0 0
      %403 = vmatpush1.bf16.msra.mxu0 0
      %404 = vmatprep.subr.bf16.mxu0 0
      %405 = vmatpush1.bf16.msra.mxu0 0
      %406 = vmatprep.mubr.bf16.mxu0 0
      %407 = vmatmul.mubr.bf16.gmra.mrb[0].mxu0 %v351
      %v408 = vpop.f32.mrb[0].mxu0
      %v409 = vadd.f32 0.0, %v408
      %v410 = vpop.f32.mrb[0].mxu0
      %v411 = vpop.f32.mrb[0].mxu0
      %v412 = vadd.f32 0.0, %v411
      %v413 = vpop.f32.mrb[0].mxu0
      %414 = vmatprep.mubr.bf16.mxu0 0
      %415 = vmatmul.mubr.bf16.gmra.mrb[0].mxu0 %v354
      %v416 = vpop.f32.mrb[0].mxu0
      %v417 = vadd.f32 0.0, %v416
      %v418 = vpop.f32.mrb[0].mxu0
      %v419 = vpop.f32.mrb[0].mxu0
      %v420 = vadd.f32 0.0, %v419
      %v421 = vpop.f32.mrb[0].mxu0
      %422 = vmatprep.mubr.bf16.mxu0 0
      %423 = vmatmul.mubr.bf16.gmra.mrb[0].mxu0 %v357
      %v424 = vpop.f32.mrb[0].mxu0
      %v425 = vadd.f32 0.0, %v424
      %v426 = vpop.f32.mrb[0].mxu0
      %v427 = vpop.f32.mrb[0].mxu0
      %v428 = vadd.f32 0.0, %v427
      %v429 = vpop.f32.mrb[0].mxu0
      %430 = vmatprep.mubr.bf16.mxu0 0
      %431 = vmatmul.mubr.bf16.gmra.mrb[0].mxu0 %v360
      %v432 = vpop.f32.mrb[0].mxu0
      %v433 = vadd.f32 0.0, %v432
      %v434 = vpop.f32.mrb[0].mxu0
      %v435 = vpop.f32.mrb[0].mxu0
      %v436 = vadd.f32 0.0, %v435
      %v437 = vpop.f32.mrb[0].mxu0
      %438 = vmatprep.mubr.bf16.mxu0 0
      %439 = vmatmul.mubr.bf16.gmra.mrb[0].mxu0 %v363
      %v440 = vpop.f32.mrb[0].mxu0
      %v441 = vadd.f32 0.0, %v440
      %v442 = vpop.f32.mrb[0].mxu0
      %v443 = vpop.f32.mrb[0].mxu0
      %v444 = vadd.f32 0.0, %v443
      %v445 = vpop.f32.mrb[0].mxu0
      %446 = vmatprep.mubr.bf16.mxu0 0
      %447 = vmatmul.mubr.bf16.gmra.mrb[0].mxu0 %v366
      %v448 = vpop.f32.mrb[0].mxu0
      %v449 = vadd.f32 0.0, %v448
      %v450 = vpop.f32.mrb[0].mxu0
      %v451 = vpop.f32.mrb[0].mxu0
      %v452 = vadd.f32 0.0, %v451
      %v453 = vpop.f32.mrb[0].mxu0
      %454 = vmatprep.mubr.bf16.mxu0 0
      %455 = vmatmul.mubr.bf16.gmra.mrb[0].mxu0 %v369
      %v456 = vpop.f32.mrb[0].mxu0
      %v457 = vadd.f32 0.0, %v456
      %v458 = vpop.f32.mrb[0].mxu0
      %v459 = vpop.f32.mrb[0].mxu0
      %v460 = vadd.f32 0.0, %v459
      %v461 = vpop.f32.mrb[0].mxu0
      %462 = vmatprep.mubr.bf16.mxu0 0
      %463 = vmatmul.mubr.bf16.gmra.mrb[0].mxu0 %v372
      %v464 = vpop.f32.mrb[0].mxu0
      %v465 = vadd.f32 0.0, %v464
      %v466 = vpop.f32.mrb[0].mxu0
      %v467 = vpop.f32.mrb[0].mxu0
      %v468 = vadd.f32 0.0, %v467
      %v469 = vpop.f32.mrb[0].mxu0
      %470 = vdwg.mxu0
      %471 = vst [vmem:[%s250] sm:$0xff] %v409
      %472 = vst [vmem:[%s250 + $0x8] sm:$0xff] %v412
      %473 = vst [vmem:[%s250 + $0x10] sm:$0xff] %v417
      %474 = vst [vmem:[%s250 + $0x18] sm:$0xff] %v420
      %475 = vst [vmem:[%s250 + $0x20] sm:$0xff] %v425
      %476 = vst [vmem:[%s250 + $0x28] sm:$0xff] %v428
      %477 = vst [vmem:[%s250 + $0x30] sm:$0xff] %v433
      %478 = vst [vmem:[%s250 + $0x38] sm:$0xff] %v436
      %479 = vst [vmem:[%s250 + $0x40] sm:$0xff] %v441
      %480 = vst [vmem:[%s250 + $0x48] sm:$0xff] %v444
      %481 = vst [vmem:[%s250 + $0x50] sm:$0xff] %v449
      %482 = vst [vmem:[%s250 + $0x58] sm:$0xff] %v452
      %483 = vst [vmem:[%s250 + $0x60] sm:$0xff] %v457
      %484 = vst [vmem:[%s250 + $0x68] sm:$0xff] %v460
      %485 = vst [vmem:[%s250 + $0x70] sm:$0xff] %v465
      %486 = vst [vmem:[%s250 + $0x78] sm:$0xff] %v468
      %v487 = vld [vmem:[#allocation2] sm:$0x1]
      %v488 = vadd.f32 %v409, %v412
      %v489 = vadd.f32 %v488, %v417
      %v490 = vadd.f32 %v489, %v420
      %v491 = vadd.f32 %v490, %v425
      %v492 = vadd.f32 %v491, %v428
      %v493 = vadd.f32 %v492, %v433
      %v494 = vadd.f32 %v493, %v436
      %v495 = vadd.f32 %v494, %v441
      %v496 = vadd.f32 %v495, %v444
      %v497 = vadd.f32 %v496, %v449
      %v498 = vadd.f32 %v497, %v452
      %v499 = vadd.f32 %v498, %v457
      %v500 = vadd.f32 %v499, %v460
      %v501 = vadd.f32 %v500, %v465
      %v502 = vadd.f32 %v501, %v468
      %v503 = vrot.slane %v502, 4
      %v504 = vadd.f32 %v502, %v503
      %v505 = vrot.slane %v504, 2
      %v506 = vadd.f32 %v504, %v505
      %v507 = vrot.slane %v506, 1
      %v508 = vadd.f32 %v506, %v507
      %v509 = vadd.f32 %v487, %v508
      %510 = vst [vmem:[#allocation2] sm:$0x1] %v509
      %v511 = vld [vmem:[#allocation3] sm:$0x1]
      %v512 = vmul.f32 %v409, %v409
      %v513 = vmul.f32 %v412, %v412
      %v514 = vmul.f32 %v417, %v417
      %v515 = vmul.f32 %v420, %v420
      %v516 = vmul.f32 %v425, %v425
      %v517 = vmul.f32 %v428, %v428
      %v518 = vmul.f32 %v433, %v433
      %v519 = vmul.f32 %v436, %v436
      %v520 = vmul.f32 %v441, %v441
      %v521 = vmul.f32 %v444, %v444
      %v522 = vmul.f32 %v449, %v449
      %v523 = vmul.f32 %v452, %v452
      %v524 = vmul.f32 %v457, %v457
      %v525 = vmul.f32 %v460, %v460
      %v526 = vmul.f32 %v465, %v465
      %v527 = vmul.f32 %v468, %v468
      %v528 = vadd.f32 %v512, %v513
      %v529 = vadd.f32 %v528, %v514
      %v530 = vadd.f32 %v529, %v515
      %v531 = vadd.f32 %v530, %v516
      %v532 = vadd.f32 %v531, %v517
      %v533 = vadd.f32 %v532, %v518
      %v534 = vadd.f32 %v533, %v519
      %v535 = vadd.f32 %v534, %v520
      %v536 = vadd.f32 %v535, %v521
      %v537 = vadd.f32 %v536, %v522
      %v538 = vadd.f32 %v537, %v523
      %v539 = vadd.f32 %v538, %v524
      %v540 = vadd.f32 %v539, %v525
      %v541 = vadd.f32 %v540, %v526
      %v542 = vadd.f32 %v541, %v527
      %v543 = vrot.slane %v542, 4
      %v544 = vadd.f32 %v542, %v543
      %v545 = vrot.slane %v544, 2
      %v546 = vadd.f32 %v544, %v545
      %v547 = vrot.slane %v546, 1
      %v548 = vadd.f32 %v546, %v547
      %v549 = vadd.f32 %v511, %v548
      %550 = vst [vmem:[#allocation3] sm:$0x1] %v549
      %v551 = vld [vmem:[#allocation2] sm:$0x1]
      %552 = vst [vmem:[%s3] sm:$0x1] %v551
      %v553 = vld [vmem:[#allocation3] sm:$0x1]
      %554 = vst [vmem:[%s4] sm:$0x1] %v553
      %s555 = smul.u32 16, %s21
      %p556 = scmp.lt.s32.totalorder %s20, 7
      %s557 = scalar_select %p556, %s20, 7
      %p558 = scmp.lt.s32.totalorder %s555, 15
      %s559 = scalar_select %p558, %s555, 15
      %s560 = smul.addr %s557, 16
      %s561 = sadd.s32 %s559, %s560
      %s562 = smul.addr %s561, 8
      %s563 = scalar_lea.vmem %s2, %s562
      // Predicated region
      $region33: #{deconv3d_skip_forward.2} parent=27 // pred_check
        %p564 = pneg %p102
      $region34: #{deconv3d_skip_forward.2} parent=27 // pred_check_branch
        %566 = sbr.rel (%p564) target = $region36
      $region35: #{deconv3d_skip_forward.2} parent=27 // pred_region
        %s567 = smul.u32 16, %s21
      $region36: #{deconv3d_skip_forward.2} parent=27 // pred_fallthru
        _
      // Predicated region
      $region37: #{deconv3d_skip_forward.2} parent=27 // pred_check
        %p568 = pneg %p123
      $region38: #{deconv3d_skip_forward.2} parent=27 // pred_check_branch
        %570 = sbr.rel (%p568) target = $region40
      $region39: #{deconv3d_skip_forward.2} parent=27 // pred_region
        _
      $region40: #{deconv3d_skip_forward.2} parent=27 // pred_fallthru
        _
      // Predicated region
      $region41: #{deconv3d_skip_forward.2} parent=27 // pred_check
        %p571 = pneg %p144
      $region42: #{deconv3d_skip_forward.2} parent=27 // pred_check_branch
        %573 = sbr.rel (%p571) target = $region44
      $region43: #{deconv3d_skip_forward.2} parent=27 // pred_region
        _
      $region44: #{deconv3d_skip_forward.2} parent=27 // pred_fallthru
        _
      // Predicated region
      $region45: #{deconv3d_skip_forward.2} parent=27 // pred_check
        %p574 = pneg %p123
      $region46: #{deconv3d_skip_forward.2} parent=27 // pred_check_branch
        %576 = sbr.rel (%p574) target = $region48
      $region47: #{deconv3d_skip_forward.2} parent=27 // pred_region
        _
      $region48: #{deconv3d_skip_forward.2} parent=27 // pred_fallthru
        _
      // Predicated region
      $region49: #{deconv3d_skip_forward.2} parent=27 // pred_check
        %p577 = pneg %p144
      $region50: #{deconv3d_skip_forward.2} parent=27 // pred_check_branch
        %579 = sbr.rel (%p577) target = $region52
      $region51: #{deconv3d_skip_forward.2} parent=27 // pred_region
        _
      $region52: #{deconv3d_skip_forward.2} parent=27 // pred_fallthru
        _
    $region28: #{deconv3d_skip_forward.2} parent=5 // pred_fallthru
      _
    %p580 = scmp.le.s32.totalorder 2, %s11
    // Predicated region
    $region53: #{deconv3d_skip_forward.2} parent=5 // pred_check
      %p581 = pneg %p580
    $region54: #{deconv3d_skip_forward.2} parent=5 // pred_check_branch
      %583 = sbr.rel (%p581) target = $region56
    $region55: #{deconv3d_skip_forward.2} parent=5 // pred_region
      %s584 = ssub.s32 %s11, 2
      // Predicated region
      $region57: #{deconv3d_skip_forward.2} parent=55 // pred_check
        %p585 = pneg %p108
      $region58: #{deconv3d_skip_forward.2} parent=55 // pred_check_branch
        %587 = sbr.rel (%p585) target = $region60
      $region59: #{deconv3d_skip_forward.2} parent=55 // pred_region
        %s588 = smul.u32 16, %s23
        %p589 = scmp.lt.s32.totalorder %s22, 7
        %s590 = scalar_select %p589, %s22, 7
        %p591 = scmp.lt.s32.totalorder %s588, 15
        %s592 = scalar_select %p591, %s588, 15
        %s593 = smul.addr %s590, 16
        %s594 = sadd.s32 %s592, %s593
        %s595 = smul.addr %s594, 8
        %s596 = scalar_lea.vmem %s2, %s595
      $region60: #{deconv3d_skip_forward.2} parent=55 // pred_fallthru
        _
    $region56: #{deconv3d_skip_forward.2} parent=5 // pred_fallthru
      _
  $region6: #{deconv3d_skip_forward.2} parent=0 // loop_footer
    %s15 = sadd.s32 1, %s11
  $region7: #{deconv3d_skip_forward.2} parent=0 // loop_footer_branch
    %10 = sbr.rel target = $region3
  $region8: #{deconv3d_skip_forward.2} parent=0 // loop_exit
    _

</llo_original>
